<compile_context>
chip_gen: v5e
topology: v5e:2x2
jax: 0.10.0
libtpu: 0.0.40
codegen_flags: <defaults>
</compile_context>

<pallas_src>
import jax
import jax.numpy as jnp
from jax.experimental import pallas as pl
from jax.experimental.pallas import tpu as pltpu


def _round_up(x, m):
    return (x + m - 1) // m * m


def _mlp_proj_kernel(x_ref, w1_ref, b1_ref, w2_ref, b2_ref, o_ref):
    # x:  (TB, H)  f32/bf16   w1: (H, H)  bf16 (in, out)   b1: (1, H)   f32
    # w2: (H, Lp)  bf16 (in, out)                          b2: (1, Lp)  f32
    # o:  (TB, Lp) f32
    x = x_ref[...].astype(w1_ref.dtype)  # bf16 operands -> full MXU rate
    h = jnp.dot(x, w1_ref[...], preferred_element_type=jnp.float32) + b1_ref[...]
    # Dropout: identity (inference semantics).
    # TODO(synk): training-mode dropout (pltpu.prng_seed + stateful_bernoulli + 1/(1-p)
    #             scaling) is not implemented; do not use this kernel under train().
    h = jnp.maximum(h, 0.0)  # ReLU on the f32 accumulator result
    y = jnp.dot(h.astype(w2_ref.dtype), w2_ref[...],
                preferred_element_type=jnp.float32) + b2_ref[...]
    o_ref[...] = y.astype(o_ref.dtype)


def prepare_params(w1, b1, w2, b2, compute_dtype=jnp.bfloat16):
    """One-time ("model-load") parameter prep: transpose to (in, out), pad the output
    lane dim to a multiple of 128, cast weights to the MXU compute dtype.

    Args (PyTorch nn.Linear layouts): w1: (H, H)  b1: (H,)  w2: (L, H)  b2: (L,)
    """
    H = w1.shape[0]
    L = w2.shape[0]
    L_pad = _round_up(L, 128)

    w1_t = jnp.transpose(w1).astype(compute_dtype)                       # (H, H)
    w2_t = jnp.pad(jnp.transpose(w2), ((0, 0), (0, L_pad - L)))          # (H, L_pad)
    w2_t = w2_t.astype(compute_dtype)
    b1_2d = b1.astype(jnp.float32).reshape(1, H)
    b2_2d = jnp.pad(b2.astype(jnp.float32), (0, L_pad - L)).reshape(1, L_pad)
    return dict(w1=w1_t, b1=b1_2d, w2=w2_t, b2=b2_2d, num_labels=L)


def _vmem_bytes(tb, H, L_pad, x_itemsize, w_itemsize, weight_buffers):
    weights = weight_buffers * (H * H + H * L_pad) * w_itemsize
    biases = weight_buffers * (H + L_pad) * 4
    x_tiles = 2 * tb * H * x_itemsize        # double-buffered streamed input
    out_tiles = 2 * tb * L_pad * 4           # double-buffered streamed output
    interm = tb * H * 4 + tb * L_pad * 4     # f32 h / y intermediates in VMEM
    return weights + biases + x_tiles + out_tiles + interm


# Remember whether this jax/Mosaic accepts single-buffered resident weights.
_SINGLE_BUFFER_WEIGHTS_OK = [True]


def attention1d_pooling_projection(x, params, *, batch_tile=256):
    """Pallas forward of the PyTorch module.

    Args:
      x: (B, H) float32 (or bfloat16, if the upstream pooling already produces bf16 --
         this halves the dominant HBM stream in the memory-bound regime).
      params: output of prepare_params()
      batch_tile: rows per grid step (raise to 512-1024 on v6e for large B; keep <=256 on
                  v7x where VMEM is 64 MiB/TC).
    Returns:
      (B, L) float32
    """
    B, H = x.shape
    w1, b1, w2, b2 = params["w1"], params["b1"], params["w2"], params["b2"]
    L = params["num_labels"]
    L_pad = w2.shape[1]
    assert w1.shape == (H, H) and w2.shape[0] == H

    # ---- batch tile selection -------------------------------------------------------
    if B <= batch_tile:
        # Split a single big tile in two so a v7x megacore "parallel" grid has work for
        # both TensorCores; tiny batches stay single-tile (partial blocks are handled).
        TB = _round_up((B + 1) // 2, 8) if B >= 256 else _round_up(max(B, 1), 8)
    else:
        TB = batch_tile

    # ---- explicit VMEM budget -------------------------------------------------------
    try:
        vmem_cap = int(pltpu.get_tpu_info().vmem_capacity_bytes)
    except Exception:
        vmem_cap = 64 * 1024 * 1024            # v7x per-TC size: smallest across gens
    vmem_cap_usable = (vmem_cap * 4) // 5      # headroom for Mosaic internal scratch

    def needed(tb):
        # Conservative: assume double-buffered weights (covers the fallback path too).
        return _vmem_bytes(tb, H, L_pad, x.dtype.itemsize, w1.dtype.itemsize, 2)

    while TB > 8 and needed(TB) + needed(TB) // 4 > vmem_cap_usable:
        TB = max(8, _round_up(TB // 2, 8))
    # TODO(synk): if even TB=8 cannot fit (bf16 w1 alone >= ~40 MiB, i.e. H >~ 4600 on
    #             v7x), switch to a K-tiled accumulator plan (grid over H/TK marked
    #             "arbitrary", f32 scratch accumulator, pl.when init/finalize).

    vmem_limit = int(min(vmem_cap_usable,
                         max(needed(TB) + needed(TB) // 4, 32 * 1024 * 1024)))

    n_tiles = pl.cdiv(B, TB)
    cost = pl.CostEstimate(
        flops=2 * B * H * (H + L_pad),
        transcendentals=0,
        bytes_accessed=int(B * H * x.dtype.itemsize
                           + (H * H + H * L_pad) * w1.dtype.itemsize
                           + (H + L_pad) * 4
                           + B * L_pad * 4),
    )

    def build(single_buffer_weights):
        res_kw = dict(pipeline_mode=pl.Buffered(1)) if single_buffer_weights else {}
        return pl.pallas_call(
            _mlp_proj_kernel,
            out_shape=jax.ShapeDtypeStruct((B, L_pad), jnp.float32),
            grid_spec=pltpu.PrefetchScalarGridSpec(
                num_scalar_prefetch=0,
                grid=(n_tiles,),
                in_specs=[
                    pl.BlockSpec((TB, H), lambda i: (i, 0)),               # x: streamed
                    pl.BlockSpec((H, H), lambda i: (0, 0), **res_kw),      # w1: resident
                    pl.BlockSpec((1, H), lambda i: (0, 0), **res_kw),      # b1: resident
                    pl.BlockSpec((H, L_pad), lambda i: (0, 0), **res_kw),  # w2: resident
                    pl.BlockSpec((1, L_pad), lambda i: (0, 0), **res_kw),  # b2: resident
                ],
                out_specs=pl.BlockSpec((TB, L_pad), lambda i: (i, 0)),
            ),
            compiler_params=pltpu.CompilerParams(
                dimension_semantics=("parallel",),   # independent tiles -> megacore shard
                vmem_limit_bytes=vmem_limit),
            cost_estimate=cost,
        )

    if _SINGLE_BUFFER_WEIGHTS_OK[0]:
        try:
            out = build(True)(x, w1, b1, w2, b2)
            return out[:, :L]
        except Exception:
            _SINGLE_BUFFER_WEIGHTS_OK[0] = False   # fall through to double-buffered weights

    out = build(False)(x, w1, b1, w2, b2)
    return out[:, :L]


if __name__ == "__main__":
    key = jax.random.PRNGKey(0)

    def reference_bf16(x, w1, b1, w2, b2):
        # Mirrors the kernel's dtype choices (bf16 matmuls, f32 accumulation).
        cd = jnp.bfloat16
        h = jnp.dot(x.astype(cd), jnp.transpose(w1).astype(cd),
                    preferred_element_type=jnp.float32) + b1
        h = jnp.maximum(h, 0.0)
        return jnp.dot(h.astype(cd), jnp.transpose(w2).astype(cd),
                       preferred_element_type=jnp.float32) + b2

    # Small shapes consistent with the module, plus a multi-tile case with a partial
    # final block (B=300, TB=128 -> 3 blocks) to exercise pipelined batch tiling and
    # boundary-block handling.
    for (B, H, L, tb) in [(2, 32, 4, 256), (300, 128, 10, 128)]:
        kx, kw1, kb1, kw2, kb2, key = jax.random.split(key, 6)
        x = jax.random.normal(kx, (B, H), dtype=jnp.float32)
        # PyTorch nn.Linear layouts: weight (out, in), bias (out,)
        w1 = jax.random.normal(kw1, (H, H), dtype=jnp.float32) * 0.1
        b1 = jax.random.normal(kb1, (H,), dtype=jnp.float32) * 0.1
        w2 = jax.random.normal(kw2, (L, H), dtype=jnp.float32) * 0.1
        b2 = jax.random.normal(kb2, (L,), dtype=jnp.float32) * 0.1

        params = prepare_params(w1, b1, w2, b2)  # one-time transpose / pad / bf16 cast
        out = attention1d_pooling_projection(x, params, batch_tile=tb)
        out = jax.block_until_ready(out)
        assert out.shape == (B, L)

        ref_bf16 = reference_bf16(x, w1, b1, w2, b2)               # dtype-matched ref
        ref_f32 = jnp.maximum(x @ w1.T + b1, 0.0) @ w2.T + b2      # exact module math
        assert jnp.allclose(out, ref_bf16, atol=2e-3, rtol=2e-3), "mismatch vs bf16 ref"
        assert jnp.allclose(out, ref_f32, atol=5e-2, rtol=5e-2), "mismatch vs f32 ref"

    print("KERNEL_OK")
</pallas_src>

<mosaic_0001>
module attributes {stable_mosaic.version = 11 : i64} {
  func.func @_mlp_proj_kernel(%arg0: i32, %arg1: memref<8x32xf32, #tpu.memory_space<vmem>>, %arg2: memref<32x32xbf16, #tpu.memory_space<vmem>>, %arg3: memref<1x32xf32, #tpu.memory_space<vmem>>, %arg4: memref<32x128xbf16, #tpu.memory_space<vmem>>, %arg5: memref<1x128xf32, #tpu.memory_space<vmem>>, %arg6: memref<8x128xf32, #tpu.memory_space<vmem>>) attributes {dimension_semantics = [#tpu.dimension_semantics<parallel>], iteration_bounds = array<i64: 1>, scalar_prefetch = 0 : i64, scratch_operands = 0 : i64, tpu.core_type = #tpu.core_type<tc>, window_params = [{transform_indices = @transform_0, window_bounds = array<i64: 8, 32>}, {pipeline_mode = #tpu.pipeline_mode<synchronous>, transform_indices = @transform_1, window_bounds = array<i64: 32, 32>}, {pipeline_mode = #tpu.pipeline_mode<synchronous>, transform_indices = @transform_2, window_bounds = array<i64: 1, 32>}, {pipeline_mode = #tpu.pipeline_mode<synchronous>, transform_indices = @transform_3, window_bounds = array<i64: 32, 128>}, {pipeline_mode = #tpu.pipeline_mode<synchronous>, transform_indices = @transform_4, window_bounds = array<i64: 1, 128>}, {transform_indices = @transform_5, window_bounds = array<i64: 8, 128>}]} {
    %c0 = arith.constant 0 : index
    %c0_0 = arith.constant 0 : index
    %0 = vector.load %arg1[%c0, %c0_0] : memref<8x32xf32, #tpu.memory_space<vmem>>, vector<8x32xf32>
    %1 = arith.truncf %0 : vector<8x32xf32> to vector<8x32xbf16>
    %c0_1 = arith.constant 0 : index
    %c0_2 = arith.constant 0 : index
    %2 = vector.load %arg2[%c0_1, %c0_2] : memref<32x32xbf16, #tpu.memory_space<vmem>>, vector<32x32xbf16>
    %cst = arith.constant dense<0.000000e+00> : vector<8x32xf32>
    %3 = tpu.matmul %1, %2, %cst {dimension_numbers = #tpu.dot_dimension_numbers<[1], [0], [0], [1], [0, 0, 1, 1], [], []>} : vector<8x32xbf16>, vector<32x32xbf16>, vector<8x32xf32> -> vector<8x32xf32>
    %c0_3 = arith.constant 0 : index
    %c0_4 = arith.constant 0 : index
    %4 = vector.load %arg3[%c0_3, %c0_4] : memref<1x32xf32, #tpu.memory_space<vmem>>, vector<1x32xf32>
    %5 = vector.broadcast %4 : vector<1x32xf32> to vector<8x32xf32>
    %6 = arith.addf %3, %5 : vector<8x32xf32>
    %cst_5 = arith.constant 0.000000e+00 : f32
    %7 = vector.broadcast %cst_5 : f32 to vector<8x32xf32>
    %8 = arith.maximumf %6, %7 : vector<8x32xf32>
    %9 = arith.truncf %8 : vector<8x32xf32> to vector<8x32xbf16>
    %c0_6 = arith.constant 0 : index
    %c0_7 = arith.constant 0 : index
    %10 = vector.load %arg4[%c0_6, %c0_7] : memref<32x128xbf16, #tpu.memory_space<vmem>>, vector<32x128xbf16>
    %cst_8 = arith.constant dense<0.000000e+00> : vector<8x128xf32>
    %11 = tpu.matmul %9, %10, %cst_8 {dimension_numbers = #tpu.dot_dimension_numbers<[1], [0], [0], [1], [0, 0, 1, 1], [], []>} : vector<8x32xbf16>, vector<32x128xbf16>, vector<8x128xf32> -> vector<8x128xf32>
    %c0_9 = arith.constant 0 : index
    %c0_10 = arith.constant 0 : index
    %12 = vector.load %arg5[%c0_9, %c0_10] : memref<1x128xf32, #tpu.memory_space<vmem>>, vector<1x128xf32>
    %13 = vector.broadcast %12 : vector<1x128xf32> to vector<8x128xf32>
    %14 = arith.addf %11, %13 : vector<8x128xf32>
    %c0_11 = arith.constant 0 : index
    %c0_12 = arith.constant 0 : index
    %15 = vector.load %arg6[%c0_11, %c0_12] : memref<8x128xf32, #tpu.memory_space<vmem>>, vector<8x128xf32>
    tpu.vector_store %arg6[%c0_11, %c0_12], %14 {strides = array<i32>} : memref<8x128xf32, #tpu.memory_space<vmem>>, vector<8x128xf32>,
    return
  }
  func.func @transform_0(%arg0: i32) -> (i32, i32) {
    %c0_i32 = arith.constant 0 : i32
    %c0_i32_0 = arith.constant 0 : i32
    return %arg0, %c0_i32 : i32, i32
  }
  func.func @transform_1(%arg0: i32) -> (i32, i32) {
    %c0_i32 = arith.constant 0 : i32
    %c0_i32_0 = arith.constant 0 : i32
    %c0_i32_1 = arith.constant 0 : i32
    return %c0_i32, %c0_i32_0 : i32, i32
  }
  func.func @transform_2(%arg0: i32) -> (i32, i32) {
    %c0_i32 = arith.constant 0 : i32
    %c0_i32_0 = arith.constant 0 : i32
    %c0_i32_1 = arith.constant 0 : i32
    return %c0_i32, %c0_i32_0 : i32, i32
  }
  func.func @transform_3(%arg0: i32) -> (i32, i32) {
    %c0_i32 = arith.constant 0 : i32
    %c0_i32_0 = arith.constant 0 : i32
    %c0_i32_1 = arith.constant 0 : i32
    return %c0_i32, %c0_i32_0 : i32, i32
  }
  func.func @transform_4(%arg0: i32) -> (i32, i32) {
    %c0_i32 = arith.constant 0 : i32
    %c0_i32_0 = arith.constant 0 : i32
    %c0_i32_1 = arith.constant 0 : i32
    return %c0_i32, %c0_i32_0 : i32, i32
  }
  func.func @transform_5(%arg0: i32) -> (i32, i32) {
    %c0_i32 = arith.constant 0 : i32
    %c0_i32_0 = arith.constant 0 : i32
    return %arg0, %c0_i32 : i32, i32
  }
}

module attributes {stable_mosaic.version = 11 : i64} {
  func.func @_mlp_proj_kernel(%arg0: i32, %arg1: memref<8x32xf32, #tpu.memory_space<vmem>>, %arg2: memref<32x32xbf16, #tpu.memory_space<vmem>>, %arg3: memref<1x32xf32, #tpu.memory_space<vmem>>, %arg4: memref<32x128xbf16, #tpu.memory_space<vmem>>, %arg5: memref<1x128xf32, #tpu.memory_space<vmem>>, %arg6: memref<8x128xf32, #tpu.memory_space<vmem>>) attributes {dimension_semantics = [#tpu.dimension_semantics<parallel>], iteration_bounds = array<i64: 1>, scalar_prefetch = 0 : i64, scratch_operands = 0 : i64, tpu.core_type = #tpu.core_type<tc>, window_params = [{transform_indices = @transform_0, window_bounds = array<i64: 8, 32>}, {pipeline_mode = #tpu.pipeline_mode<synchronous>, transform_indices = @transform_1, window_bounds = array<i64: 32, 32>}, {pipeline_mode = #tpu.pipeline_mode<synchronous>, transform_indices = @transform_2, window_bounds = array<i64: 1, 32>}, {pipeline_mode = #tpu.pipeline_mode<synchronous>, transform_indices = @transform_3, window_bounds = array<i64: 32, 128>}, {pipeline_mode = #tpu.pipeline_mode<synchronous>, transform_indices = @transform_4, window_bounds = array<i64: 1, 128>}, {transform_indices = @transform_5, window_bounds = array<i64: 8, 128>}]} {
    %c0 = arith.constant 0 : index
    %c0_0 = arith.constant 0 : index
    %0 = vector.load %arg1[%c0, %c0_0] : memref<8x32xf32, #tpu.memory_space<vmem>>, vector<8x32xf32>
    %1 = arith.truncf %0 : vector<8x32xf32> to vector<8x32xbf16>
    %c0_1 = arith.constant 0 : index
    %c0_2 = arith.constant 0 : index
    %2 = vector.load %arg2[%c0_1, %c0_2] : memref<32x32xbf16, #tpu.memory_space<vmem>>, vector<32x32xbf16>
    %cst = arith.constant dense<0.000000e+00> : vector<8x32xf32>
    %3 = tpu.matmul %1, %2, %cst {dimension_numbers = #tpu.dot_dimension_numbers<[1], [0], [0], [1], [0, 0, 1, 1], [], []>} : vector<8x32xbf16>, vector<32x32xbf16>, vector<8x32xf32> -> vector<8x32xf32>
    %c0_3 = arith.constant 0 : index
    %c0_4 = arith.constant 0 : index
    %4 = vector.load %arg3[%c0_3, %c0_4] : memref<1x32xf32, #tpu.memory_space<vmem>>, vector<1x32xf32>
    %5 = vector.broadcast %4 : vector<1x32xf32> to vector<8x32xf32>
    %6 = arith.addf %3, %5 : vector<8x32xf32>
    %cst_5 = arith.constant 0.000000e+00 : f32
    %7 = vector.broadcast %cst_5 : f32 to vector<8x32xf32>
    %8 = arith.maximumf %6, %7 : vector<8x32xf32>
    %9 = arith.truncf %8 : vector<8x32xf32> to vector<8x32xbf16>
    %c0_6 = arith.constant 0 : index
    %c0_7 = arith.constant 0 : index
    %10 = vector.load %arg4[%c0_6, %c0_7] : memref<32x128xbf16, #tpu.memory_space<vmem>>, vector<32x128xbf16>
    %cst_8 = arith.constant dense<0.000000e+00> : vector<8x128xf32>
    %11 = tpu.matmul %9, %10, %cst_8 {dimension_numbers = #tpu.dot_dimension_numbers<[1], [0], [0], [1], [0, 0, 1, 1], [], []>} : vector<8x32xbf16>, vector<32x128xbf16>, vector<8x128xf32> -> vector<8x128xf32>
    %c0_9 = arith.constant 0 : index
    %c0_10 = arith.constant 0 : index
    %12 = vector.load %arg5[%c0_9, %c0_10] : memref<1x128xf32, #tpu.memory_space<vmem>>, vector<1x128xf32>
    %13 = vector.broadcast %12 : vector<1x128xf32> to vector<8x128xf32>
    %14 = arith.addf %11, %13 : vector<8x128xf32>
    %c0_11 = arith.constant 0 : index
    %c0_12 = arith.constant 0 : index
    %15 = vector.load %arg6[%c0_11, %c0_12] : memref<8x128xf32, #tpu.memory_space<vmem>>, vector<8x128xf32>
    tpu.vector_store %arg6[%c0_11, %c0_12], %14 {strides = array<i32>} : memref<8x128xf32, #tpu.memory_space<vmem>>, vector<8x128xf32>,
    return
  }
  func.func @transform_0(%arg0: i32) -> (i32, i32) {
    %c0_i32 = arith.constant 0 : i32
    %c0_i32_0 = arith.constant 0 : i32
    return %arg0, %c0_i32 : i32, i32
  }
  func.func @transform_1(%arg0: i32) -> (i32, i32) {
    %c0_i32 = arith.constant 0 : i32
    %c0_i32_0 = arith.constant 0 : i32
    %c0_i32_1 = arith.constant 0 : i32
    return %c0_i32, %c0_i32_0 : i32, i32
  }
  func.func @transform_2(%arg0: i32) -> (i32, i32) {
    %c0_i32 = arith.constant 0 : i32
    %c0_i32_0 = arith.constant 0 : i32
    %c0_i32_1 = arith.constant 0 : i32
    return %c0_i32, %c0_i32_0 : i32, i32
  }
  func.func @transform_3(%arg0: i32) -> (i32, i32) {
    %c0_i32 = arith.constant 0 : i32
    %c0_i32_0 = arith.constant 0 : i32
    %c0_i32_1 = arith.constant 0 : i32
    return %c0_i32, %c0_i32_0 : i32, i32
  }
  func.func @transform_4(%arg0: i32) -> (i32, i32) {
    %c0_i32 = arith.constant 0 : i32
    %c0_i32_0 = arith.constant 0 : i32
    %c0_i32_1 = arith.constant 0 : i32
    return %c0_i32, %c0_i32_0 : i32, i32
  }
  func.func @transform_5(%arg0: i32) -> (i32, i32) {
    %c0_i32 = arith.constant 0 : i32
    %c0_i32_0 = arith.constant 0 : i32
    return %arg0, %c0_i32 : i32, i32
  }
}

</mosaic_0001>

<llo_original>
// kernel: tpu_custom_call.1
$region0: #{tpu_custom_call.1}
  #allocation0 [shape = 'u32[]', space=smem, size = 0x4, offset = 0x4, fixed_abs, tag = 'smem constant byte address 0x4 - core index']
  #allocation1 [shape = 'u32[72,128]{1,0:T(1,128)}', space=vmem, size = 0x9000, scoped, tag = 'internal scratch']
  %s0 = inlined_call_operand.hbm [shape: f32[2,32], index: 0, kind: input, shape index: {}]
  %s1 = inlined_call_operand.hbm [shape: bf16[32,32], index: 1, kind: input, shape index: {}]
  %s2 = inlined_call_operand.vmem [shape: f32[1,32], index: 2, kind: input, shape index: {}]
  %s3 = inlined_call_operand.hbm [shape: bf16[32,128], index: 3, kind: input, shape index: {}]
  %s4 = inlined_call_operand.vmem [shape: f32[1,128], index: 4, kind: input, shape index: {}]
  %s5 = inlined_call_operand.hbm [shape: f32[2,128], index: 5, kind: output, shape index: {}]
  %s6 = sld [smem:[#allocation0]]
  $region42: #{tpu_custom_call.1} parent=0
    _
  %s8 = ssub.s32 1, %s6
  %s9 = scalar_select 0, %s8, %s6
  $region1: #{tpu_custom_call.1} parent=0
    #allocation2 [shape = 'u8[4096]{0}', space=vmem, size = 0x1000, scoped, tag = 'input window, operand 0, single buffered']
    #allocation3 [shape = 's32[1]{0}', space=sflag, size = 0x4, scoped, tag = 'scoped memory for tpu_custom_call.1']
    #allocation4 [shape = 's32[1]{0}', space=sflag, size = 0x4, scoped, tag = 'scoped memory for tpu_custom_call.1']
    #allocation5 [shape = 'u8[8192]{0}', space=vmem, size = 0x2000, scoped, tag = 'input window, operand 1, single buffered']
    #allocation6 [shape = 's32[1]{0}', space=sflag, size = 0x4, scoped, tag = 'scoped memory for tpu_custom_call.1']
    #allocation7 [shape = 'u8[8192]{0}', space=vmem, size = 0x2000, scoped, tag = 'input window, operand 3, single buffered']
    #allocation8 [shape = 'u8[4096]{0}', space=vmem, size = 0x1000, scoped, tag = 'output window, operand 0, single buffered']
    %10 = vsyncpa [#allocation3], 0
    %11 = vsyncpa [#allocation6], 0
    %12 = vsyncpa [#allocation4], 0
    // Predicated region
    $region2: #{tpu_custom_call.1} parent=1 // pred_check
      _
    $region3: #{tpu_custom_call.1} parent=1 // pred_check_branch
      %14 = sbr.rel (0) target = $region5
    $region4: #{tpu_custom_call.1} parent=1 // pred_region
      %16 = vsyncadd [#allocation3], 96
      %s17 = sshll.u32 %s0, 4
      %s18 = int_to_ptr.hbm [resolvable:$true] %s17
      %s19 = sshll.u32 [#allocation2], 4
      %s20 = int_to_ptr.vmem [resolvable:$true] %s19
      %25 = dma.hbm_to_vmem [thread:$0]  %s18, 32, %s20, [#allocation3], 32, 32, 2
    $region5: #{tpu_custom_call.1} parent=1 // pred_fallthru
      _
    // Predicated region
    $region6: #{tpu_custom_call.1} parent=1 // pred_check
      _
    $region7: #{tpu_custom_call.1} parent=1 // pred_check_branch
      %27 = sbr.rel (0) target = $region9
    $region8: #{tpu_custom_call.1} parent=1 // pred_region
      %29 = vsyncadd [#allocation6], 0
      %s30 = sshll.u32 %s1, 4
      %s31 = int_to_ptr.hbm [resolvable:$true] %s30
      %s32 = sshll.u32 [#allocation5], 4
      %s33 = int_to_ptr.vmem [resolvable:$true] %s32
      %38 = dma.hbm_to_vmem [thread:$0]  %s31, 256, %s33, [#allocation6], 64, 64, 4
    $region9: #{tpu_custom_call.1} parent=1 // pred_fallthru
      _
    // Predicated region
    $region10: #{tpu_custom_call.1} parent=1 // pred_check
      _
    $region11: #{tpu_custom_call.1} parent=1 // pred_check_branch
      %40 = sbr.rel (0) target = $region13
    $region12: #{tpu_custom_call.1} parent=1 // pred_region
      _
    $region13: #{tpu_custom_call.1} parent=1 // pred_fallthru
      _
    // Predicated region
    $region14: #{tpu_custom_call.1} parent=1 // pred_check
      _
    $region15: #{tpu_custom_call.1} parent=1 // pred_check_branch
      %42 = sbr.rel (0) target = $region17
    $region16: #{tpu_custom_call.1} parent=1 // pred_region
      %44 = vsyncadd [#allocation6], 0
      %s45 = sshll.u32 %s3, 4
      %s46 = int_to_ptr.hbm [resolvable:$true] %s45
      %s47 = sshll.u32 [#allocation7], 4
      %s48 = int_to_ptr.vmem [resolvable:$true] %s47
      %53 = dma.hbm_to_vmem [thread:$0]  %s46, 256, %s48, [#allocation6], 64, 64, 4
    $region17: #{tpu_custom_call.1} parent=1 // pred_fallthru
      _
    // Predicated region
    $region18: #{tpu_custom_call.1} parent=1 // pred_check
      _
    $region19: #{tpu_custom_call.1} parent=1 // pred_check_branch
      %55 = sbr.rel (0) target = $region21
    $region20: #{tpu_custom_call.1} parent=1 // pred_region
      _
    $region21: #{tpu_custom_call.1} parent=1 // pred_fallthru
      _
    // Predicated region
    $region22: #{tpu_custom_call.1} parent=1 // pred_check
      _
    $region23: #{tpu_custom_call.1} parent=1 // pred_check_branch
      %57 = sbr.rel (0) target = $region25
    $region24: #{tpu_custom_call.1} parent=1 // pred_region
      %59 = dma.done [#allocation3], 128
    $region25: #{tpu_custom_call.1} parent=1 // pred_fallthru
      _
    // Predicated region
    $region26: #{tpu_custom_call.1} parent=1 // pred_check
      _
    $region27: #{tpu_custom_call.1} parent=1 // pred_check_branch
      %61 = sbr.rel (0) target = $region29
    $region28: #{tpu_custom_call.1} parent=1 // pred_region
      %63 = dma.done [#allocation6], 256
    $region29: #{tpu_custom_call.1} parent=1 // pred_fallthru
      _
    // Predicated region
    $region30: #{tpu_custom_call.1} parent=1 // pred_check
      _
    $region31: #{tpu_custom_call.1} parent=1 // pred_check_branch
      %65 = sbr.rel (0) target = $region33
    $region32: #{tpu_custom_call.1} parent=1 // pred_region
      %67 = dma.done [#allocation6], 256
    $region33: #{tpu_custom_call.1} parent=1 // pred_fallthru
      _
    %v69 = vld [vmem:[#allocation2] sm:$0xff]
    %v70 = vpack.c.bf16 %v69, %v69
    %v71 = vld [vmem:[#allocation5] sm:$0xf]
    %v72 = vld [vmem:[#allocation5 + $0x4] sm:$0xf]
    %v73 = vld [vmem:[#allocation5 + $0x8] sm:$0xf]
    %v74 = vld [vmem:[#allocation5 + $0xc] sm:$0xf]
    %v75 = vld [vmem:[%s2] sm:$0x1]
    %v77 = vperm.slane %v75, 0
    %v83 = vunpack.c.l.b16 %v71
    %v84 = vunpack.c.l.b16 %v72
    %v85 = vunpack.c.l.b16 %v73
    %v86 = vunpack.c.l.b16 %v74
    %v87 = vpack.c.b16 %v84, %v83
    %v88 = vpack.c.b16 %v86, %v85
    %vm91 = vcmask 261120
    %v93 = vsel %vm91, %v70, 0
    %95 = vmatpush.bf16.msra.mxu0 0
    %96 = vmatpush.bf16.msra.mxu0 0
    %97 = vmatpush.bf16.msra.mxu0 0
    %98 = vmatpush.bf16.msra.mxu0 0
    %99 = vmatpush.bf16.msra.mxu0 0
    %100 = vmatpush.bf16.msra.mxu0 0
    %101 = vmatpush.bf16.msra.mxu0 %v88
    %102 = vmatpush.bf16.msra.mxu0 %v87
    %103 = vmatmul.bf16.gmra.mxu0 %v93
    %v104 = vpop.f32.mrf.mxu0
    %v105 = vadd.f32 %v77, %v104
    %v106 = vpop.f32.mrf.mxu0
    %107 = vdwg.mxu0
    %v108 = vmax.f32 %v105, 0.0
    %v109 = vpack.c.bf16 %v108, %v108
    %v110 = vld [vmem:[#allocation7] sm:$0xf]
    %v111 = vld [vmem:[#allocation7 + $0x4] sm:$0xf]
    %v112 = vld [vmem:[#allocation7 + $0x8] sm:$0xf]
    %v113 = vld [vmem:[#allocation7 + $0xc] sm:$0xf]
    %v114 = vld [vmem:[%s4] sm:$0x1]
    %v116 = vperm.slane %v114, 0
    %v122 = vunpack.c.l.b16 %v110
    %v123 = vunpack.c.l.b16 %v111
    %v124 = vunpack.c.l.b16 %v112
    %v125 = vunpack.c.l.b16 %v113
    %v126 = vpack.c.b16 %v123, %v122
    %v127 = vpack.c.b16 %v125, %v124
    %v131 = vsel %vm91, %v109, 0
    %133 = vmatpush.bf16.msra.mxu0 0
    %134 = vmatpush.bf16.msra.mxu0 0
    %135 = vmatpush.bf16.msra.mxu0 0
    %136 = vmatpush.bf16.msra.mxu0 0
    %137 = vmatpush.bf16.msra.mxu0 0
    %138 = vmatpush.bf16.msra.mxu0 0
    %139 = vmatpush.bf16.msra.mxu0 %v127
    %140 = vmatpush.bf16.msra.mxu0 %v126
    %141 = vmatmul.bf16.gmra.mxu0 %v131
    %v142 = vpop.f32.mrf.mxu0
    %v143 = vadd.f32 %v116, %v142
    %v144 = vpop.f32.mrf.mxu0
    %145 = vdwg.mxu0
    %146 = vst [vmem:[#allocation8] sm:$0xff] %v143
    // Predicated region
    $region34: #{tpu_custom_call.1} parent=1 // pred_check
      _
    $region35: #{tpu_custom_call.1} parent=1 // pred_check_branch
      %148 = sbr.rel (0) target = $region37
    $region36: #{tpu_custom_call.1} parent=1 // pred_region
      %150 = vsyncadd [#allocation4], 96
      %s151 = sshll.u32 [#allocation8], 4
      %s152 = int_to_ptr.vmem [resolvable:$true] %s151
      %s153 = sshll.u32 %s5, 4
      %s154 = int_to_ptr.hbm [resolvable:$true] %s153
      %159 = dma.vmem_to_hbm [thread:$0]  %s152, 32, %s154, [#allocation4], 32, 32, 2
    $region37: #{tpu_custom_call.1} parent=1 // pred_fallthru
      _
    // Predicated region
    $region38: #{tpu_custom_call.1} parent=1 // pred_check
      _
    $region39: #{tpu_custom_call.1} parent=1 // pred_check_branch
      %161 = sbr.rel (0) target = $region41
    $region40: #{tpu_custom_call.1} parent=1 // pred_region
      %163 = dma.done [#allocation4], 128
    $region41: #{tpu_custom_call.1} parent=1 // pred_fallthru
      _
    %164 = vsyncpa [#allocation3], 1
    %165 = vsyncpa [#allocation6], 1
    %166 = vsyncpa [#allocation4], 1

// kernel: tpu_custom_call.1
$region0: #{tpu_custom_call.1}
  #allocation0 [shape = 'u32[]', space=smem, size = 0x4, offset = 0x4, fixed_abs, tag = 'smem constant byte address 0x4 - core index']
  #allocation1 [shape = 'u32[72,128]{1,0:T(1,128)}', space=vmem, size = 0x9000, scoped, tag = 'internal scratch']
  %s0 = inlined_call_operand.hbm [shape: f32[2,32], index: 0, kind: input, shape index: {}]
  %s1 = inlined_call_operand.hbm [shape: bf16[32,32], index: 1, kind: input, shape index: {}]
  %s2 = inlined_call_operand.vmem [shape: f32[1,32], index: 2, kind: input, shape index: {}]
  %s3 = inlined_call_operand.hbm [shape: bf16[32,128], index: 3, kind: input, shape index: {}]
  %s4 = inlined_call_operand.vmem [shape: f32[1,128], index: 4, kind: input, shape index: {}]
  %s5 = inlined_call_operand.hbm [shape: f32[2,128], index: 5, kind: output, shape index: {}]
  %s6 = sld [smem:[#allocation0]]
  $region42: #{tpu_custom_call.1} parent=0
    _
  %s8 = ssub.s32 1, %s6
  %s9 = scalar_select 0, %s8, %s6
  $region1: #{tpu_custom_call.1} parent=0
    #allocation2 [shape = 'u8[4096]{0}', space=vmem, size = 0x1000, scoped, tag = 'input window, operand 0, single buffered']
    #allocation3 [shape = 's32[1]{0}', space=sflag, size = 0x4, scoped, tag = 'scoped memory for tpu_custom_call.1']
    #allocation4 [shape = 's32[1]{0}', space=sflag, size = 0x4, scoped, tag = 'scoped memory for tpu_custom_call.1']
    #allocation5 [shape = 'u8[8192]{0}', space=vmem, size = 0x2000, scoped, tag = 'input window, operand 1, single buffered']
    #allocation6 [shape = 's32[1]{0}', space=sflag, size = 0x4, scoped, tag = 'scoped memory for tpu_custom_call.1']
    #allocation7 [shape = 'u8[8192]{0}', space=vmem, size = 0x2000, scoped, tag = 'input window, operand 3, single buffered']
    #allocation8 [shape = 'u8[4096]{0}', space=vmem, size = 0x1000, scoped, tag = 'output window, operand 0, single buffered']
    %10 = vsyncpa [#allocation3], 0
    %11 = vsyncpa [#allocation6], 0
    %12 = vsyncpa [#allocation4], 0
    // Predicated region
    $region2: #{tpu_custom_call.1} parent=1 // pred_check
      _
    $region3: #{tpu_custom_call.1} parent=1 // pred_check_branch
      %14 = sbr.rel (0) target = $region5
    $region4: #{tpu_custom_call.1} parent=1 // pred_region
      %16 = vsyncadd [#allocation3], 96
      %s17 = sshll.u32 %s0, 4
      %s18 = int_to_ptr.hbm [resolvable:$true] %s17
      %s19 = sshll.u32 [#allocation2], 4
      %s20 = int_to_ptr.vmem [resolvable:$true] %s19
      %25 = dma.hbm_to_vmem [thread:$0]  %s18, 32, %s20, [#allocation3], 32, 32, 2
    $region5: #{tpu_custom_call.1} parent=1 // pred_fallthru
      _
    // Predicated region
    $region6: #{tpu_custom_call.1} parent=1 // pred_check
      _
    $region7: #{tpu_custom_call.1} parent=1 // pred_check_branch
      %27 = sbr.rel (0) target = $region9
    $region8: #{tpu_custom_call.1} parent=1 // pred_region
      %29 = vsyncadd [#allocation6], 0
      %s30 = sshll.u32 %s1, 4
      %s31 = int_to_ptr.hbm [resolvable:$true] %s30
      %s32 = sshll.u32 [#allocation5], 4
      %s33 = int_to_ptr.vmem [resolvable:$true] %s32
      %38 = dma.hbm_to_vmem [thread:$0]  %s31, 256, %s33, [#allocation6], 64, 64, 4
    $region9: #{tpu_custom_call.1} parent=1 // pred_fallthru
      _
    // Predicated region
    $region10: #{tpu_custom_call.1} parent=1 // pred_check
      _
    $region11: #{tpu_custom_call.1} parent=1 // pred_check_branch
      %40 = sbr.rel (0) target = $region13
    $region12: #{tpu_custom_call.1} parent=1 // pred_region
      _
    $region13: #{tpu_custom_call.1} parent=1 // pred_fallthru
      _
    // Predicated region
    $region14: #{tpu_custom_call.1} parent=1 // pred_check
      _
    $region15: #{tpu_custom_call.1} parent=1 // pred_check_branch
      %42 = sbr.rel (0) target = $region17
    $region16: #{tpu_custom_call.1} parent=1 // pred_region
      %44 = vsyncadd [#allocation6], 0
      %s45 = sshll.u32 %s3, 4
      %s46 = int_to_ptr.hbm [resolvable:$true] %s45
      %s47 = sshll.u32 [#allocation7], 4
      %s48 = int_to_ptr.vmem [resolvable:$true] %s47
      %53 = dma.hbm_to_vmem [thread:$0]  %s46, 256, %s48, [#allocation6], 64, 64, 4
    $region17: #{tpu_custom_call.1} parent=1 // pred_fallthru
      _
    // Predicated region
    $region18: #{tpu_custom_call.1} parent=1 // pred_check
      _
    $region19: #{tpu_custom_call.1} parent=1 // pred_check_branch
      %55 = sbr.rel (0) target = $region21
    $region20: #{tpu_custom_call.1} parent=1 // pred_region
      _
    $region21: #{tpu_custom_call.1} parent=1 // pred_fallthru
      _
    // Predicated region
    $region22: #{tpu_custom_call.1} parent=1 // pred_check
      _
    $region23: #{tpu_custom_call.1} parent=1 // pred_check_branch
      %57 = sbr.rel (0) target = $region25
    $region24: #{tpu_custom_call.1} parent=1 // pred_region
      %59 = dma.done [#allocation3], 128
    $region25: #{tpu_custom_call.1} parent=1 // pred_fallthru
      _
    // Predicated region
    $region26: #{tpu_custom_call.1} parent=1 // pred_check
      _
    $region27: #{tpu_custom_call.1} parent=1 // pred_check_branch
      %61 = sbr.rel (0) target = $region29
    $region28: #{tpu_custom_call.1} parent=1 // pred_region
      %63 = dma.done [#allocation6], 256
    $region29: #{tpu_custom_call.1} parent=1 // pred_fallthru
      _
    // Predicated region
    $region30: #{tpu_custom_call.1} parent=1 // pred_check
      _
    $region31: #{tpu_custom_call.1} parent=1 // pred_check_branch
      %65 = sbr.rel (0) target = $region33
    $region32: #{tpu_custom_call.1} parent=1 // pred_region
      %67 = dma.done [#allocation6], 256
    $region33: #{tpu_custom_call.1} parent=1 // pred_fallthru
      _
    %v69 = vld [vmem:[#allocation2] sm:$0xff]
    %v70 = vpack.c.bf16 %v69, %v69
    %v71 = vld [vmem:[#allocation5] sm:$0xf]
    %v72 = vld [vmem:[#allocation5 + $0x4] sm:$0xf]
    %v73 = vld [vmem:[#allocation5 + $0x8] sm:$0xf]
    %v74 = vld [vmem:[#allocation5 + $0xc] sm:$0xf]
    %v75 = vld [vmem:[%s2] sm:$0x1]
    %v77 = vperm.slane %v75, 0
    %v83 = vunpack.c.l.b16 %v71
    %v84 = vunpack.c.l.b16 %v72
    %v85 = vunpack.c.l.b16 %v73
    %v86 = vunpack.c.l.b16 %v74
    %v87 = vpack.c.b16 %v84, %v83
    %v88 = vpack.c.b16 %v86, %v85
    %vm91 = vcmask 261120
    %v93 = vsel %vm91, %v70, 0
    %95 = vmatpush.bf16.msra.mxu0 0
    %96 = vmatpush.bf16.msra.mxu0 0
    %97 = vmatpush.bf16.msra.mxu0 0
    %98 = vmatpush.bf16.msra.mxu0 0
    %99 = vmatpush.bf16.msra.mxu0 0
    %100 = vmatpush.bf16.msra.mxu0 0
    %101 = vmatpush.bf16.msra.mxu0 %v88
    %102 = vmatpush.bf16.msra.mxu0 %v87
    %103 = vmatmul.bf16.gmra.mxu0 %v93
    %v104 = vpop.f32.mrf.mxu0
    %v105 = vadd.f32 %v77, %v104
    %v106 = vpop.f32.mrf.mxu0
    %107 = vdwg.mxu0
    %v108 = vmax.f32 %v105, 0.0
    %v109 = vpack.c.bf16 %v108, %v108
    %v110 = vld [vmem:[#allocation7] sm:$0xf]
    %v111 = vld [vmem:[#allocation7 + $0x4] sm:$0xf]
    %v112 = vld [vmem:[#allocation7 + $0x8] sm:$0xf]
    %v113 = vld [vmem:[#allocation7 + $0xc] sm:$0xf]
    %v114 = vld [vmem:[%s4] sm:$0x1]
    %v116 = vperm.slane %v114, 0
    %v122 = vunpack.c.l.b16 %v110
    %v123 = vunpack.c.l.b16 %v111
    %v124 = vunpack.c.l.b16 %v112
    %v125 = vunpack.c.l.b16 %v113
    %v126 = vpack.c.b16 %v123, %v122
    %v127 = vpack.c.b16 %v125, %v124
    %v131 = vsel %vm91, %v109, 0
    %133 = vmatpush.bf16.msra.mxu0 0
    %134 = vmatpush.bf16.msra.mxu0 0
    %135 = vmatpush.bf16.msra.mxu0 0
    %136 = vmatpush.bf16.msra.mxu0 0
    %137 = vmatpush.bf16.msra.mxu0 0
    %138 = vmatpush.bf16.msra.mxu0 0
    %139 = vmatpush.bf16.msra.mxu0 %v127
    %140 = vmatpush.bf16.msra.mxu0 %v126
    %141 = vmatmul.bf16.gmra.mxu0 %v131
    %v142 = vpop.f32.mrf.mxu0
    %v143 = vadd.f32 %v116, %v142
    %v144 = vpop.f32.mrf.mxu0
    %145 = vdwg.mxu0
    %146 = vst [vmem:[#allocation8] sm:$0xff] %v143
    // Predicated region
    $region34: #{tpu_custom_call.1} parent=1 // pred_check
      _
    $region35: #{tpu_custom_call.1} parent=1 // pred_check_branch
      %148 = sbr.rel (0) target = $region37
    $region36: #{tpu_custom_call.1} parent=1 // pred_region
      %150 = vsyncadd [#allocation4], 96
      %s151 = sshll.u32 [#allocation8], 4
      %s152 = int_to_ptr.vmem [resolvable:$true] %s151
      %s153 = sshll.u32 %s5, 4
      %s154 = int_to_ptr.hbm [resolvable:$true] %s153
      %159 = dma.vmem_to_hbm [thread:$0]  %s152, 32, %s154, [#allocation4], 32, 32, 2
    $region37: #{tpu_custom_call.1} parent=1 // pred_fallthru
      _
    // Predicated region
    $region38: #{tpu_custom_call.1} parent=1 // pred_check
      _
    $region39: #{tpu_custom_call.1} parent=1 // pred_check_branch
      %161 = sbr.rel (0) target = $region41
    $region40: #{tpu_custom_call.1} parent=1 // pred_region
      %163 = dma.done [#allocation4], 128
    $region41: #{tpu_custom_call.1} parent=1 // pred_fallthru
      _
    %164 = vsyncpa [#allocation3], 1
    %165 = vsyncpa [#allocation6], 1
    %166 = vsyncpa [#allocation4], 1

</llo_original>
